<compile_context>
chip_gen: v7x
topology: tpu7x:2x2x1
jax: 0.10.0
libtpu: 0.0.40
codegen_flags: <defaults>
</compile_context>

<pallas_src>
import functools

import jax
import jax.numpy as jnp
from jax import lax
from jax.experimental import pallas as pl
from jax.experimental.pallas import tpu as pltpu


def _fuse_mlp_kernel(x_ref, g_ref, b_ref, w1_ref, b1_ref, w2_ref, b2_ref,
                     o_ref, xn_ref, acc_ref, *, eps, compute_dtype):
    # x_ref/o_ref: (TM, D)    g/b/b2: (1, D)
    # w1_ref: (D, TH)         b1_ref: (1, TH)      w2_ref: (TH, D)
    # xn_ref: (TM, D) compute_dtype scratch;  acc_ref: (TM, D) f32 scratch
    k = pl.program_id(1)
    nk = pl.num_programs(1)

    @pl.when(k == 0)
    def _init():
        # LayerNorm over the embedding dim, computed once per row block in f32.
        x = x_ref[...].astype(jnp.float32)
        mean = jnp.mean(x, axis=-1, keepdims=True)
        xc = x - mean
        var = jnp.mean(xc * xc, axis=-1, keepdims=True)
        xn = xc * lax.rsqrt(var + eps) * g_ref[...] + b_ref[...]
        xn_ref[...] = xn.astype(compute_dtype)          # bf16 operand for MXU
        acc_ref[...] = jnp.zeros_like(acc_ref)

    # fc1 slice (D x TH) -> GELU -> fc2 slice (TH x D), accumulated in f32.
    h = jnp.dot(xn_ref[...], w1_ref[...], preferred_element_type=jnp.float32)
    h = h + b1_ref[...]
    # TODO(synk): PyTorch nn.GELU() defaults to the exact erf form; tanh
    # approximation is used here for guaranteed Mosaic lowering (|err| < 1e-3).
    h = jax.nn.gelu(h, approximate=True)
    acc_ref[...] += jnp.dot(h.astype(compute_dtype), w2_ref[...],
                            preferred_element_type=jnp.float32)

    @pl.when(k == nk - 1)
    def _finish():
        y = acc_ref[...] + b2_ref[...]
        # Residual add on the original-dtype x tile (single f32 upcast, no copy
        # held live across the matmuls).
        o_ref[...] = (x_ref[...].astype(jnp.float32) + y).astype(o_ref.dtype)


def _round_up(a, m):
    return -(-a // m) * m


def fuse_mlp(x, gamma, beta, w1, b1, w2, b2, *, eps=1e-5,
             compute_dtype=jnp.bfloat16, row_tile=256, hidden_tile=512):
    """x: (B, N, D). gamma/beta: (D,). w1: (D, H), b1: (H,). w2: (H, D), b2: (D,).

    Weights are in "math" layout (already transposed from nn.Linear's
    (out_features, in_features)).  Returns x + MLP(LayerNorm(x)), shape (B, N, D).
    """
    B, N, D = x.shape
    H = w1.shape[1]
    M = B * N

    # MXU-aligned tiles; pad ragged M / H with zeros (exact: padded rows are
    # discarded, padded hidden columns contribute gelu(0)*0 = 0).
    TM = min(row_tile, _round_up(M, 8))
    TH = min(hidden_tile, _round_up(H, 128))
    M_pad = _round_up(M, TM)
    H_pad = _round_up(H, TH)

    x2 = x.reshape(M, D)
    if M_pad != M:
        x2 = jnp.pad(x2, ((0, M_pad - M), (0, 0)))

    w1c = w1.astype(compute_dtype)
    w2c = w2.astype(compute_dtype)
    b1f = b1.astype(jnp.float32)
    b2f = b2.astype(jnp.float32)
    if H_pad != H:
        w1c = jnp.pad(w1c, ((0, 0), (0, H_pad - H)))
        b1f = jnp.pad(b1f, (0, H_pad - H))
        w2c = jnp.pad(w2c, ((0, H_pad - H), (0, 0)))

    grid = (M_pad // TM, H_pad // TH)
    kernel = functools.partial(_fuse_mlp_kernel, eps=eps,
                               compute_dtype=compute_dtype)

    in_itemsize = jnp.dtype(x.dtype).itemsize
    w_itemsize = jnp.dtype(compute_dtype).itemsize
    cost = pl.CostEstimate(
        flops=4 * M_pad * D * H_pad,                       # two matmuls
        transcendentals=M_pad * H_pad,                     # tanh in GELU
        bytes_accessed=(2 * M_pad * D * in_itemsize        # x in + out
                        + 2 * D * H_pad * w_itemsize       # W1 + W2
                        + (3 * D + H_pad) * 4))            # gamma/beta/biases

    out = pl.pallas_call(
        kernel,
        out_shape=jax.ShapeDtypeStruct((M_pad, D), x.dtype),
        grid_spec=pltpu.PrefetchScalarGridSpec(
            num_scalar_prefetch=0,
            grid=grid,
            in_specs=[
                pl.BlockSpec((TM, D), lambda i, k: (i, 0)),    # x row block
                pl.BlockSpec((1, D), lambda i, k: (0, 0)),     # LN gamma
                pl.BlockSpec((1, D), lambda i, k: (0, 0)),     # LN beta
                pl.BlockSpec((D, TH), lambda i, k: (0, k)),    # W1 hidden slab
                pl.BlockSpec((1, TH), lambda i, k: (0, k)),    # b1 hidden slab
                pl.BlockSpec((TH, D), lambda i, k: (k, 0)),    # W2 hidden slab
                pl.BlockSpec((1, D), lambda i, k: (0, 0)),     # b2
            ],
            out_specs=pl.BlockSpec((TM, D), lambda i, k: (i, 0)),
            scratch_shapes=[
                pltpu.VMEM((TM, D), compute_dtype),   # cached LayerNorm output
                pltpu.VMEM((TM, D), jnp.float32),     # fc2 accumulator
            ]),
        compiler_params=pltpu.CompilerParams(
            dimension_semantics=("parallel", "arbitrary"),
            vmem_limit_bytes=64 * 1024 * 1024),
        cost_estimate=cost,
    )(x2,
      gamma.reshape(1, D).astype(jnp.float32),
      beta.reshape(1, D).astype(jnp.float32),
      w1c, b1f.reshape(1, H_pad), w2c, b2f.reshape(1, D))

    return out[:M].reshape(B, N, D)


def _reference(x, gamma, beta, w1, b1, w2, b2, eps=1e-5):
    mean = jnp.mean(x, axis=-1, keepdims=True)
    var = jnp.mean((x - mean) ** 2, axis=-1, keepdims=True)
    xn = (x - mean) * lax.rsqrt(var + eps) * gamma + beta
    h = jax.nn.gelu(
        jnp.dot(xn, w1, precision=lax.Precision.HIGHEST) + b1, approximate=True)
    y = jnp.dot(h, w2, precision=lax.Precision.HIGHEST) + b2
    return x + y


if __name__ == "__main__":
    # Small shapes consistent with the module: batch=2, seq=8, embed_dim=32, mlp_ratio=4.
    B, N, D = 2, 8, 32
    H = 4 * D

    key = jax.random.PRNGKey(0)
    ks = jax.random.split(key, 7)

    x = jax.random.normal(ks[0], (B, N, D), dtype=jnp.float32)
    gamma = 1.0 + 0.1 * jax.random.normal(ks[1], (D,), dtype=jnp.float32)
    beta = 0.1 * jax.random.normal(ks[2], (D,), dtype=jnp.float32)

    bound1 = 1.0 / (D ** 0.5)
    w1 = jax.random.uniform(ks[3], (D, H), jnp.float32, -bound1, bound1)
    b1 = jax.random.uniform(ks[4], (H,), jnp.float32, -bound1, bound1)
    bound2 = 1.0 / (H ** 0.5)
    w2 = jax.random.uniform(ks[5], (H, D), jnp.float32, -bound2, bound2)
    b2 = jax.random.uniform(ks[6], (D,), jnp.float32, -bound2, bound2)

    out = jax.block_until_ready(fuse_mlp(x, gamma, beta, w1, b1, w2, b2))
    ref = _reference(x, gamma, beta, w1, b1, w2, b2)
    # Tolerance covers bf16 MXU operands (f32 accumulation) vs the f32 reference.
    assert out.shape == ref.shape
    assert jnp.allclose(out, ref, atol=2.5e-2, rtol=2.5e-2), "mismatch vs reference"

    # Ragged-row case (M % 8 != 0, exercises the cdiv + zero-padding path).
    N2 = 13
    x_odd = jax.random.normal(ks[6], (B, N2, D), dtype=jnp.float32)
    out_odd = jax.block_until_ready(fuse_mlp(x_odd, gamma, beta, w1, b1, w2, b2))
    ref_odd = _reference(x_odd, gamma, beta, w1, b1, w2, b2)
    assert jnp.allclose(out_odd, ref_odd, atol=2.5e-2, rtol=2.5e-2), \
        "mismatch vs reference (padded rows)"

    print("KERNEL_OK")
</pallas_src>

<mosaic_0001>
module attributes {stable_mosaic.version = 11 : i64} {
  func.func @_fuse_mlp_kernel(%arg0: i32, %arg1: i32, %arg2: memref<16x32xf32, #tpu.memory_space<vmem>>, %arg3: memref<1x32xf32, #tpu.memory_space<vmem>>, %arg4: memref<1x32xf32, #tpu.memory_space<vmem>>, %arg5: memref<32x128xbf16, #tpu.memory_space<vmem>>, %arg6: memref<1x128xf32, #tpu.memory_space<vmem>>, %arg7: memref<128x32xbf16, #tpu.memory_space<vmem>>, %arg8: memref<1x32xf32, #tpu.memory_space<vmem>>, %arg9: memref<16x32xf32, #tpu.memory_space<vmem>>, %arg10: memref<16x32xbf16, #tpu.memory_space<vmem>>, %arg11: memref<16x32xf32, #tpu.memory_space<vmem>>) attributes {dimension_semantics = [#tpu.dimension_semantics<parallel>, #tpu.dimension_semantics<arbitrary>], iteration_bounds = array<i64: 1, 1>, scalar_prefetch = 0 : i64, scratch_operands = 2 : i64, tpu.core_type = #tpu.core_type<tc>, window_params = [{transform_indices = @transform_0, window_bounds = array<i64: 16, 32>}, {pipeline_mode = #tpu.pipeline_mode<synchronous>, transform_indices = @transform_1, window_bounds = array<i64: 1, 32>}, {pipeline_mode = #tpu.pipeline_mode<synchronous>, transform_indices = @transform_2, window_bounds = array<i64: 1, 32>}, {transform_indices = @transform_3, window_bounds = array<i64: 32, 128>}, {transform_indices = @transform_4, window_bounds = array<i64: 1, 128>}, {transform_indices = @transform_5, window_bounds = array<i64: 128, 32>}, {pipeline_mode = #tpu.pipeline_mode<synchronous>, transform_indices = @transform_6, window_bounds = array<i64: 1, 32>}, {transform_indices = @transform_7, window_bounds = array<i64: 16, 32>}]} {
    %c0_i32 = arith.constant 0 : i32
    %0 = arith.cmpi eq, %arg1, %c0_i32 : i32
    %1 = arith.extui %0 : i1 to i32
    %c0_i32_0 = arith.constant 0 : i32
    %2 = arith.cmpi ne, %1, %c0_i32_0 : i32
    scf.if %2 {
      %c0_19 = arith.constant 0 : index
      %c0_20 = arith.constant 0 : index
      %31 = vector.load %arg2[%c0_19, %c0_20] : memref<16x32xf32, #tpu.memory_space<vmem>>, vector<16x32xf32>
      %cst_21 = arith.constant dense<0.000000e+00> : vector<16xf32>
      %32 = vector.multi_reduction <add>, %31, %cst_21 [1] : vector<16x32xf32> to vector<16xf32>
      %33 = vector.shape_cast %32 : vector<16xf32> to vector<16x1xf32>
      %cst_22 = arith.constant 3.200000e+01 : f32
      %34 = vector.broadcast %cst_22 : f32 to vector<16x1xf32>
      %35 = arith.divf %33, %34 : vector<16x1xf32>
      %36 = vector.broadcast %35 : vector<16x1xf32> to vector<16x32xf32>
      %37 = arith.subf %31, %36 : vector<16x32xf32>
      %38 = arith.mulf %37, %37 : vector<16x32xf32>
      %cst_23 = arith.constant dense<0.000000e+00> : vector<16xf32>
      %39 = vector.multi_reduction <add>, %38, %cst_23 [1] : vector<16x32xf32> to vector<16xf32>
      %40 = vector.shape_cast %39 : vector<16xf32> to vector<16x1xf32>
      %cst_24 = arith.constant 3.200000e+01 : f32
      %41 = vector.broadcast %cst_24 : f32 to vector<16x1xf32>
      %42 = arith.divf %40, %41 : vector<16x1xf32>
      %cst_25 = arith.constant 9.99999974E-6 : f32
      %43 = vector.broadcast %cst_25 : f32 to vector<16x1xf32>
      %44 = arith.addf %42, %43 : vector<16x1xf32>
      %45 = math.rsqrt %44 : vector<16x1xf32>
      %46 = vector.broadcast %45 : vector<16x1xf32> to vector<16x32xf32>
      %47 = arith.mulf %37, %46 : vector<16x32xf32>
      %c0_26 = arith.constant 0 : index
      %c0_27 = arith.constant 0 : index
      %48 = vector.load %arg3[%c0_26, %c0_27] : memref<1x32xf32, #tpu.memory_space<vmem>>, vector<1x32xf32>
      %49 = vector.broadcast %48 : vector<1x32xf32> to vector<16x32xf32>
      %50 = arith.mulf %47, %49 : vector<16x32xf32>
      %c0_28 = arith.constant 0 : index
      %c0_29 = arith.constant 0 : index
      %51 = vector.load %arg4[%c0_28, %c0_29] : memref<1x32xf32, #tpu.memory_space<vmem>>, vector<1x32xf32>
      %52 = vector.broadcast %51 : vector<1x32xf32> to vector<16x32xf32>
      %53 = arith.addf %50, %52 : vector<16x32xf32>
      %54 = arith.truncf %53 : vector<16x32xf32> to vector<16x32xbf16>
      %c0_30 = arith.constant 0 : index
      %c0_31 = arith.constant 0 : index
      %55 = vector.load %arg10[%c0_30, %c0_31] : memref<16x32xbf16, #tpu.memory_space<vmem>>, vector<16x32xbf16>
      tpu.vector_store %arg10[%c0_30, %c0_31], %54 {strides = array<i32>} : memref<16x32xbf16, #tpu.memory_space<vmem>>, vector<16x32xbf16>,
      %cst_32 = arith.constant 0.000000e+00 : f32
      %56 = vector.broadcast %cst_32 : f32 to vector<16x32xf32>
      %c0_33 = arith.constant 0 : index
      %c0_34 = arith.constant 0 : index
      %57 = vector.load %arg11[%c0_33, %c0_34] : memref<16x32xf32, #tpu.memory_space<vmem>>, vector<16x32xf32>
      tpu.vector_store %arg11[%c0_33, %c0_34], %56 {strides = array<i32>} : memref<16x32xf32, #tpu.memory_space<vmem>>, vector<16x32xf32>,
    } else {
    }
    %c0 = arith.constant 0 : index
    %c0_1 = arith.constant 0 : index
    %3 = vector.load %arg10[%c0, %c0_1] : memref<16x32xbf16, #tpu.memory_space<vmem>>, vector<16x32xbf16>
    %c0_2 = arith.constant 0 : index
    %c0_3 = arith.constant 0 : index
    %4 = vector.load %arg5[%c0_2, %c0_3] : memref<32x128xbf16, #tpu.memory_space<vmem>>, vector<32x128xbf16>
    %cst = arith.constant dense<0.000000e+00> : vector<16x128xf32>
    %5 = tpu.matmul %3, %4, %cst {dimension_numbers = #tpu.dot_dimension_numbers<[1], [0], [0], [1], [0, 0, 1, 1], [], []>} : vector<16x32xbf16>, vector<32x128xbf16>, vector<16x128xf32> -> vector<16x128xf32>
    %c0_4 = arith.constant 0 : index
    %c0_5 = arith.constant 0 : index
    %6 = vector.load %arg6[%c0_4, %c0_5] : memref<1x128xf32, #tpu.memory_space<vmem>>, vector<1x128xf32>
    %7 = vector.broadcast %6 : vector<1x128xf32> to vector<16x128xf32>
    %8 = arith.addf %5, %7 : vector<16x128xf32>
    %9 = arith.mulf %8, %8 : vector<16x128xf32>
    %10 = arith.mulf %8, %9 : vector<16x128xf32>
    %cst_6 = arith.constant 4.471500e-02 : f32
    %11 = vector.broadcast %cst_6 : f32 to vector<16x128xf32>
    %12 = arith.mulf %11, %10 : vector<16x128xf32>
    %13 = arith.addf %8, %12 : vector<16x128xf32>
    %cst_7 = arith.constant 0.797884583 : f32
    %14 = vector.broadcast %cst_7 : f32 to vector<16x128xf32>
    %15 = arith.mulf %14, %13 : vector<16x128xf32>
    %16 = math.tanh %15 : vector<16x128xf32>
    %cst_8 = arith.constant 1.000000e+00 : f32
    %17 = vector.broadcast %cst_8 : f32 to vector<16x128xf32>
    %18 = arith.addf %17, %16 : vector<16x128xf32>
    %cst_9 = arith.constant 5.000000e-01 : f32
    %19 = vector.broadcast %cst_9 : f32 to vector<16x128xf32>
    %20 = arith.mulf %19, %18 : vector<16x128xf32>
    %21 = arith.mulf %8, %20 : vector<16x128xf32>
    %c0_10 = arith.constant 0 : index
    %c0_11 = arith.constant 0 : index
    %22 = vector.load %arg11[%c0_10, %c0_11] : memref<16x32xf32, #tpu.memory_space<vmem>>, vector<16x32xf32>
    %23 = arith.truncf %21 : vector<16x128xf32> to vector<16x128xbf16>
    %c0_12 = arith.constant 0 : index
    %c0_13 = arith.constant 0 : index
    %24 = vector.load %arg7[%c0_12, %c0_13] : memref<128x32xbf16, #tpu.memory_space<vmem>>, vector<128x32xbf16>
    %cst_14 = arith.constant dense<0.000000e+00> : vector<16x32xf32>
    %25 = tpu.matmul %23, %24, %cst_14 {dimension_numbers = #tpu.dot_dimension_numbers<[1], [0], [0], [1], [0, 0, 1, 1], [], []>} : vector<16x128xbf16>, vector<128x32xbf16>, vector<16x32xf32> -> vector<16x32xf32>
    %26 = arith.addf %22, %25 : vector<16x32xf32>
    %c0_15 = arith.constant 0 : index
    %c0_16 = arith.constant 0 : index
    %27 = vector.load %arg11[%c0_15, %c0_16] : memref<16x32xf32, #tpu.memory_space<vmem>>, vector<16x32xf32>
    tpu.vector_store %arg11[%c0_15, %c0_16], %26 {strides = array<i32>} : memref<16x32xf32, #tpu.memory_space<vmem>>, vector<16x32xf32>,
    %c0_i32_17 = arith.constant 0 : i32
    %28 = arith.cmpi eq, %arg1, %c0_i32_17 : i32
    %29 = arith.extui %28 : i1 to i32
    %c0_i32_18 = arith.constant 0 : i32
    %30 = arith.cmpi ne, %29, %c0_i32_18 : i32
    scf.if %30 {
      %c0_19 = arith.constant 0 : index
      %c0_20 = arith.constant 0 : index
      %31 = vector.load %arg11[%c0_19, %c0_20] : memref<16x32xf32, #tpu.memory_space<vmem>>, vector<16x32xf32>
      %c0_21 = arith.constant 0 : index
      %c0_22 = arith.constant 0 : index
      %32 = vector.load %arg8[%c0_21, %c0_22] : memref<1x32xf32, #tpu.memory_space<vmem>>, vector<1x32xf32>
      %33 = vector.broadcast %32 : vector<1x32xf32> to vector<16x32xf32>
      %34 = arith.addf %31, %33 : vector<16x32xf32>
      %c0_23 = arith.constant 0 : index
      %c0_24 = arith.constant 0 : index
      %35 = vector.load %arg2[%c0_23, %c0_24] : memref<16x32xf32, #tpu.memory_space<vmem>>, vector<16x32xf32>
      %36 = arith.addf %35, %34 : vector<16x32xf32>
      %c0_25 = arith.constant 0 : index
      %c0_26 = arith.constant 0 : index
      %37 = vector.load %arg9[%c0_25, %c0_26] : memref<16x32xf32, #tpu.memory_space<vmem>>, vector<16x32xf32>
      tpu.vector_store %arg9[%c0_25, %c0_26], %36 {strides = array<i32>} : memref<16x32xf32, #tpu.memory_space<vmem>>, vector<16x32xf32>,
    } else {
    }
    return
  }
  func.func @transform_0(%arg0: i32, %arg1: i32) -> (i32, i32) {
    %c0_i32 = arith.constant 0 : i32
    %c0_i32_0 = arith.constant 0 : i32
    return %arg0, %c0_i32 : i32, i32
  }
  func.func @transform_1(%arg0: i32, %arg1: i32) -> (i32, i32) {
    %c0_i32 = arith.constant 0 : i32
    %c0_i32_0 = arith.constant 0 : i32
    %c0_i32_1 = arith.constant 0 : i32
    return %c0_i32, %c0_i32_0 : i32, i32
  }
  func.func @transform_2(%arg0: i32, %arg1: i32) -> (i32, i32) {
    %c0_i32 = arith.constant 0 : i32
    %c0_i32_0 = arith.constant 0 : i32
    %c0_i32_1 = arith.constant 0 : i32
    return %c0_i32, %c0_i32_0 : i32, i32
  }
  func.func @transform_3(%arg0: i32, %arg1: i32) -> (i32, i32) {
    %c0_i32 = arith.constant 0 : i32
    %c0_i32_0 = arith.constant 0 : i32
    return %c0_i32, %arg1 : i32, i32
  }
  func.func @transform_4(%arg0: i32, %arg1: i32) -> (i32, i32) {
    %c0_i32 = arith.constant 0 : i32
    %c0_i32_0 = arith.constant 0 : i32
    return %c0_i32, %arg1 : i32, i32
  }
  func.func @transform_5(%arg0: i32, %arg1: i32) -> (i32, i32) {
    %c0_i32 = arith.constant 0 : i32
    %c0_i32_0 = arith.constant 0 : i32
    return %arg1, %c0_i32 : i32, i32
  }
  func.func @transform_6(%arg0: i32, %arg1: i32) -> (i32, i32) {
    %c0_i32 = arith.constant 0 : i32
    %c0_i32_0 = arith.constant 0 : i32
    %c0_i32_1 = arith.constant 0 : i32
    return %c0_i32, %c0_i32_0 : i32, i32
  }
  func.func @transform_7(%arg0: i32, %arg1: i32) -> (i32, i32) {
    %c0_i32 = arith.constant 0 : i32
    %c0_i32_0 = arith.constant 0 : i32
    return %arg0, %c0_i32 : i32, i32
  }
}

</mosaic_0001>

<llo_original>
// kernel: tpu_custom_call.1
$region0: #{tpu_custom_call.1}
  #allocation0 [shape = 'u32[]', space=smem, size = 0x4, offset = 0x4, fixed_abs, tag = 'smem constant byte address 0x4 - core index']
  #allocation1 [shape = 'u32[144,128]{1,0:T(1,128)}', space=vmem, size = 0x12000, scoped, tag = 'internal scratch']
  #allocation2 [shape = 'bf16[16,32]{1,0:T(16,128)(2,1)}', space=vmem, size = 0x1000, scoped, tag = 'scratch operand']
  #allocation3 [shape = 'f32[16,32]{1,0:T(8,128)}', space=vmem, size = 0x2000, scoped, tag = 'scratch operand']
  %s0 = inlined_call_operand.hbm [shape: f32[16,32], index: 0, kind: input, shape index: {}]
  %s1 = inlined_call_operand.hbm [shape: f32[1,32], index: 1, kind: input, shape index: {}]
  %s2 = inlined_call_operand.hbm [shape: f32[1,32], index: 2, kind: input, shape index: {}]
  %s3 = inlined_call_operand.hbm [shape: bf16[32,128], index: 3, kind: input, shape index: {}]
  %s4 = inlined_call_operand.hbm [shape: f32[1,128], index: 4, kind: input, shape index: {}]
  %s5 = inlined_call_operand.hbm [shape: bf16[128,32], index: 5, kind: input, shape index: {}]
  %s6 = inlined_call_operand.hbm [shape: f32[1,32], index: 6, kind: input, shape index: {}]
  %s7 = inlined_call_operand.hbm [shape: f32[16,32], index: 7, kind: output, shape index: {}]
  %s8 = sld [smem:[#allocation0]]
  $region74: #{tpu_custom_call.1} parent=0
    _
  %s10 = ssub.s32 1, %s8
  %s11 = scalar_select 0, %s10, %s8
  $region1: #{tpu_custom_call.1} parent=0
    #allocation4 [shape = 'u8[8192]{0}', space=vmem, size = 0x2000, scoped, tag = 'input window, operand 0, single buffered']
    #allocation5 [shape = 's32[1]{0}', space=sflag, size = 0x4, scoped, tag = 'scoped memory for tpu_custom_call.1']
    #allocation6 [shape = 's32[1]{0}', space=sflag, size = 0x4, scoped, tag = 'scoped memory for tpu_custom_call.1']
    #allocation7 [shape = 'u8[512]{0}', space=vmem, size = 0x400, scoped, tag = 'input window, operand 1, single buffered']
    #allocation8 [shape = 's32[1]{0}', space=sflag, size = 0x4, scoped, tag = 'scoped memory for tpu_custom_call.1']
    #allocation9 [shape = 'u8[512]{0}', space=vmem, size = 0x400, scoped, tag = 'input window, operand 2, single buffered']
    #allocation10 [shape = 'u8[8192]{0}', space=vmem, size = 0x2000, scoped, tag = 'input window, operand 3, single buffered']
    #allocation11 [shape = 's32[1]{0}', space=sflag, size = 0x4, scoped, tag = 'scoped memory for tpu_custom_call.1']
    #allocation12 [shape = 'u8[512]{0}', space=vmem, size = 0x400, scoped, tag = 'input window, operand 4, single buffered']
    #allocation13 [shape = 'u8[32768]{0}', space=vmem, size = 0x8000, scoped, tag = 'input window, operand 5, single buffered']
    #allocation14 [shape = 's32[1]{0}', space=sflag, size = 0x4, scoped, tag = 'scoped memory for tpu_custom_call.1']
    #allocation15 [shape = 'u8[512]{0}', space=vmem, size = 0x400, scoped, tag = 'input window, operand 6, single buffered']
    #allocation16 [shape = 'u8[8192]{0}', space=vmem, size = 0x2000, scoped, tag = 'output window, operand 0, single buffered']
    %12 = vsyncpa [#allocation5], 0
    %13 = vsyncpa [#allocation8], 0
    %14 = vsyncpa [#allocation11], 0
    %15 = vsyncpa [#allocation14], 0
    %16 = vsyncpa [#allocation6], 0
    // Predicated region
    $region2: #{tpu_custom_call.1} parent=1 // pred_check
      _
    $region3: #{tpu_custom_call.1} parent=1 // pred_check_branch
      %18 = sbr.rel (0) target = $region5
    $region4: #{tpu_custom_call.1} parent=1 // pred_region
      %s20 = ssub.s32 256, 256
      %21 = vsyncadd [#allocation5], %s20
      %s22 = sshll.u32 [#allocation4], 4
      %s23 = int_to_ptr.vmem [resolvable:$true] %s22
      %28 = dma.hbm_to_vmem [thread:$0]  %s0, 256, %s23, [#allocation5], 128, 128, 8
    $region5: #{tpu_custom_call.1} parent=1 // pred_fallthru
      _
    // Predicated region
    $region6: #{tpu_custom_call.1} parent=1 // pred_check
      _
    $region7: #{tpu_custom_call.1} parent=1 // pred_check_branch
      %30 = sbr.rel (0) target = $region9
    $region8: #{tpu_custom_call.1} parent=1 // pred_region
      %s32 = ssub.s32 16, 16
      %33 = vsyncadd [#allocation8], %s32
      %s35 = sshll.u32 [#allocation7], 4
      %s36 = int_to_ptr.vmem [resolvable:$true] %s35
      %38 = dma.hbm_to_vmem [thread:$0]  %s1, 16, %s36, [#allocation8]
    $region9: #{tpu_custom_call.1} parent=1 // pred_fallthru
      _
    // Predicated region
    $region10: #{tpu_custom_call.1} parent=1 // pred_check
      _
    $region11: #{tpu_custom_call.1} parent=1 // pred_check_branch
      %40 = sbr.rel (0) target = $region13
    $region12: #{tpu_custom_call.1} parent=1 // pred_region
      %s42 = ssub.s32 16, 16
      %43 = vsyncadd [#allocation8], %s42
      %s45 = sshll.u32 [#allocation9], 4
      %s46 = int_to_ptr.vmem [resolvable:$true] %s45
      %48 = dma.hbm_to_vmem [thread:$0]  %s2, 16, %s46, [#allocation8]
    $region13: #{tpu_custom_call.1} parent=1 // pred_fallthru
      _
    // Predicated region
    $region14: #{tpu_custom_call.1} parent=1 // pred_check
      _
    $region15: #{tpu_custom_call.1} parent=1 // pred_check_branch
      %50 = sbr.rel (0) target = $region17
    $region16: #{tpu_custom_call.1} parent=1 // pred_region
      %s52 = ssub.s32 256, 256
      %53 = vsyncadd [#allocation11], %s52
      %s54 = sshll.u32 [#allocation10], 4
      %s55 = int_to_ptr.vmem [resolvable:$true] %s54
      %60 = dma.hbm_to_vmem [thread:$0]  %s3, 256, %s55, [#allocation11], 64, 64, 4
    $region17: #{tpu_custom_call.1} parent=1 // pred_fallthru
      _
    // Predicated region
    $region18: #{tpu_custom_call.1} parent=1 // pred_check
      _
    $region19: #{tpu_custom_call.1} parent=1 // pred_check_branch
      %62 = sbr.rel (0) target = $region21
    $region20: #{tpu_custom_call.1} parent=1 // pred_region
      %s64 = ssub.s32 16, 16
      %65 = vsyncadd [#allocation11], %s64
      %s67 = sshll.u32 [#allocation12], 4
      %s68 = int_to_ptr.vmem [resolvable:$true] %s67
      %70 = dma.hbm_to_vmem [thread:$0]  %s4, 16, %s68, [#allocation11]
    $region21: #{tpu_custom_call.1} parent=1 // pred_fallthru
      _
    // Predicated region
    $region22: #{tpu_custom_call.1} parent=1 // pred_check
      _
    $region23: #{tpu_custom_call.1} parent=1 // pred_check_branch
      %72 = sbr.rel (0) target = $region25
    $region24: #{tpu_custom_call.1} parent=1 // pred_region
      %s74 = ssub.s32 1024, 1024
      %75 = vsyncadd [#allocation14], %s74
      %s76 = sshll.u32 [#allocation13], 4
      %s77 = int_to_ptr.vmem [resolvable:$true] %s76
      %82 = dma.hbm_to_vmem [thread:$0]  %s5, 1024, %s77, [#allocation14], 64, 64, 4
    $region25: #{tpu_custom_call.1} parent=1 // pred_fallthru
      _
    // Predicated region
    $region26: #{tpu_custom_call.1} parent=1 // pred_check
      _
    $region27: #{tpu_custom_call.1} parent=1 // pred_check_branch
      %84 = sbr.rel (0) target = $region29
    $region28: #{tpu_custom_call.1} parent=1 // pred_region
      %s86 = ssub.s32 16, 16
      %87 = vsyncadd [#allocation14], %s86
      %s89 = sshll.u32 [#allocation15], 4
      %s90 = int_to_ptr.vmem [resolvable:$true] %s89
      %92 = dma.hbm_to_vmem [thread:$0]  %s6, 16, %s90, [#allocation14]
    $region29: #{tpu_custom_call.1} parent=1 // pred_fallthru
      _
    // Predicated region
    $region30: #{tpu_custom_call.1} parent=1 // pred_check
      _
    $region31: #{tpu_custom_call.1} parent=1 // pred_check_branch
      %94 = sbr.rel (0) target = $region33
    $region32: #{tpu_custom_call.1} parent=1 // pred_region
      %95 = dma.done [#allocation5], 256
    $region33: #{tpu_custom_call.1} parent=1 // pred_fallthru
      _
    // Predicated region
    $region34: #{tpu_custom_call.1} parent=1 // pred_check
      _
    $region35: #{tpu_custom_call.1} parent=1 // pred_check_branch
      %97 = sbr.rel (0) target = $region37
    $region36: #{tpu_custom_call.1} parent=1 // pred_region
      %98 = dma.done [#allocation8], 16
    $region37: #{tpu_custom_call.1} parent=1 // pred_fallthru
      _
    // Predicated region
    $region38: #{tpu_custom_call.1} parent=1 // pred_check
      _
    $region39: #{tpu_custom_call.1} parent=1 // pred_check_branch
      %100 = sbr.rel (0) target = $region41
    $region40: #{tpu_custom_call.1} parent=1 // pred_region
      %101 = dma.done [#allocation8], 16
    $region41: #{tpu_custom_call.1} parent=1 // pred_fallthru
      _
    // Predicated region
    $region42: #{tpu_custom_call.1} parent=1 // pred_check
      _
    $region43: #{tpu_custom_call.1} parent=1 // pred_check_branch
      %103 = sbr.rel (0) target = $region45
    $region44: #{tpu_custom_call.1} parent=1 // pred_region
      %104 = dma.done [#allocation11], 256
    $region45: #{tpu_custom_call.1} parent=1 // pred_fallthru
      _
    // Predicated region
    $region46: #{tpu_custom_call.1} parent=1 // pred_check
      _
    $region47: #{tpu_custom_call.1} parent=1 // pred_check_branch
      %106 = sbr.rel (0) target = $region49
    $region48: #{tpu_custom_call.1} parent=1 // pred_region
      %107 = dma.done [#allocation11], 16
    $region49: #{tpu_custom_call.1} parent=1 // pred_fallthru
      _
    // Predicated region
    $region50: #{tpu_custom_call.1} parent=1 // pred_check
      _
    $region51: #{tpu_custom_call.1} parent=1 // pred_check_branch
      %109 = sbr.rel (0) target = $region53
    $region52: #{tpu_custom_call.1} parent=1 // pred_region
      %110 = dma.done [#allocation14], 1024
    $region53: #{tpu_custom_call.1} parent=1 // pred_fallthru
      _
    // Predicated region
    $region54: #{tpu_custom_call.1} parent=1 // pred_check
      _
    $region55: #{tpu_custom_call.1} parent=1 // pred_check_branch
      %112 = sbr.rel (0) target = $region57
    $region56: #{tpu_custom_call.1} parent=1 // pred_region
      %113 = dma.done [#allocation14], 16
    $region57: #{tpu_custom_call.1} parent=1 // pred_fallthru
      _
    %p115 = scmp.eq.s32.totalorder 0, 0
    // Predicated region
    $region58: #{tpu_custom_call.1} parent=1 // pred_check
      %p116 = pneg %p115
    $region59: #{tpu_custom_call.1} parent=1 // pred_check_branch
      %118 = sbr.rel (%p116) target = $region61
    $region60: #{tpu_custom_call.1} parent=1 // pred_region
      %v119 = vld [vmem:[#allocation4] sm:$0xff]
      %v120 = vld [vmem:[#allocation4 + $0x8] sm:$0xff]
      %vm121 = vcmask 261120
      %v122 = vsel %vm121, %v119, 0.0
      %123 = vadd.xlane.f32.xlu0 %v122
      %v124 = vpop.xlane.xlu0 %123
      %v125 = vsel %vm121, %v120, 0.0
      %126 = vadd.xlane.f32.xlu0 %v125
      %v127 = vpop.xlane.xlu0 %126
      %v128 = vrcp.pop 32.0
      %v129 = vmul.f32 %v124, %v128
      %v130 = vmul.f32 %v127, %v128
      %v131 = vsub.f32 %v119, %v129
      %v132 = vsub.f32 %v120, %v130
      %v133 = vmul.f32 %v131, %v131
      %v134 = vmul.f32 %v132, %v132
      %v135 = vsel %vm121, %v133, 0.0
      %136 = vadd.xlane.f32.xlu0 %v135
      %v137 = vpop.xlane.xlu0 %136
      %v138 = vsel %vm121, %v134, 0.0
      %139 = vadd.xlane.f32.xlu0 %v138
      %v140 = vpop.xlane.xlu0 %139
      %v141 = vmul.f32 %v137, %v128
      %v142 = vmul.f32 %v140, %v128
      %v143 = vadd.f32 %v141, 1e-05
      %v144 = vadd.f32 %v142, 1e-05
      %v145 = vrsqrt.pop %v143
      %v146 = vrsqrt.pop %v144
      %v147 = vmul.f32 %v131, %v145
      %v148 = vmul.f32 %v132, %v146
      %v149 = vld [vmem:[#allocation7] sm:$0x1]
      %v151 = vlaneseq
      %v152 = vshrl.u32 %v151, 7
      %v153 = vsub.s32 0, %v152
      %v154 = vrot.slane %v149, %v153
      %v156 = vmul.f32 %v147, %v154
      %v157 = vmul.f32 %v148, %v154
      %v158 = vld [vmem:[#allocation9] sm:$0x1]
      %v160 = vlaneseq
      %v161 = vshrl.u32 %v160, 7
      %v162 = vsub.s32 0, %v161
      %v163 = vrot.slane %v158, %v162
      %v165 = vadd.f32 %v156, %v163
      %v166 = vadd.f32 %v157, %v163
      %v167 = vpack.c.bf16 %v166, %v165
      %168 = vst.msk [vmem:[#allocation2] sm:$0xff] %vm121, %v167
      %169 = vst.msk [vmem:[#allocation3] sm:$0xff] %vm121, 0.0
      %170 = vst.msk [vmem:[#allocation3 + $0x8] sm:$0xff] %vm121, 0.0
    $region61: #{tpu_custom_call.1} parent=1 // pred_fallthru
      _
    %v171 = vld [vmem:[#allocation2] sm:$0xff]
    %v172 = vld [vmem:[#allocation10] sm:$0xf]
    %v173 = vld [vmem:[#allocation10 + $0x4] sm:$0xf]
    %v174 = vld [vmem:[#allocation10 + $0x8] sm:$0xf]
    %v175 = vld [vmem:[#allocation10 + $0xc] sm:$0xf]
    %v176 = vld [vmem:[#allocation12] sm:$0x1]
    %v178 = vlaneseq
    %v179 = vshrl.u32 %v178, 7
    %v180 = vsub.s32 0, %v179
    %v181 = vrot.slane %v176, %v180
    %v187 = vunpack.c.l.b16 %v172
    %v188 = vunpack.c.l.b16 %v173
    %v189 = vunpack.c.l.b16 %v174
    %v190 = vunpack.c.l.b16 %v175
    %v191 = vpack.c.b16 %v188, %v187
    %v192 = vpack.c.b16 %v190, %v189
    %vm195 = vcmask 261120
    %v197 = vsel %vm195, %v171, 0
    %199 = vmatprep.subr.bf16.mxu0 0
    %200 = vmatpush1.bf16.msra.mxu0 %v191
    %201 = vmatprep.subr.bf16.mxu0 0
    %202 = vmatpush1.bf16.msra.mxu0 %v192
    %203 = vmatprep.subr.bf16.mxu0 0
    %204 = vmatpush1.bf16.msra.mxu0 0
    %205 = vmatprep.subr.bf16.mxu0 0
    %206 = vmatpush1.bf16.msra.mxu0 0
    %207 = vmatprep.subr.bf16.mxu0 0
    %208 = vmatpush1.bf16.msra.mxu0 0
    %209 = vmatprep.subr.bf16.mxu0 0
    %210 = vmatpush1.bf16.msra.mxu0 0
    %211 = vmatprep.subr.bf16.mxu0 0
    %212 = vmatpush1.bf16.msra.mxu0 0
    %213 = vmatprep.subr.bf16.mxu0 0
    %214 = vmatpush1.bf16.msra.mxu0 0
    %215 = vmatprep.subr.bf16.mxu0 0
    %216 = vmatpush1.bf16.msra.mxu0 0
    %217 = vmatprep.subr.bf16.mxu0 0
    %218 = vmatpush1.bf16.msra.mxu0 0
    %219 = vmatprep.subr.bf16.mxu0 0
    %220 = vmatpush1.bf16.msra.mxu0 0
    %221 = vmatprep.subr.bf16.mxu0 0
    %222 = vmatpush1.bf16.msra.mxu0 0
    %223 = vmatprep.subr.bf16.mxu0 0
    %224 = vmatpush1.bf16.msra.mxu0 0
    %225 = vmatprep.subr.bf16.mxu0 0
    %226 = vmatpush1.bf16.msra.mxu0 0
    %227 = vmatprep.subr.bf16.mxu0 0
    %228 = vmatpush1.bf16.msra.mxu0 0
    %229 = vmatprep.subr.bf16.mxu0 0
    %230 = vmatpush1.bf16.msra.mxu0 0
    %231 = vmatprep.mubr.bf16.mxu0 0
    %232 = vmatmul.mubr.bf16.gmra.mrb[0].mxu0 %v197
    %v233 = vpop.f32.mrb[0].mxu0
    %v234 = vadd.f32 %v181, %v233
    %v235 = vpop.f32.mrb[0].mxu0
    %v236 = vpop.f32.mrb[0].mxu0
    %v237 = vadd.f32 %v181, %v236
    %v238 = vpop.f32.mrb[0].mxu0
    %239 = vdwg.mxu0
    %v240 = vmul.f32 %v234, %v234
    %v241 = vmul.f32 %v237, %v237
    %v242 = vmul.f32 %v234, %v240
    %v243 = vmul.f32 %v237, %v241
    %v244 = vmul.f32 %v242, 0.044715
    %v245 = vmul.f32 %v243, 0.044715
    %v246 = vadd.f32 %v234, %v244
    %v247 = vadd.f32 %v237, %v245
    %v248 = vmul.f32 %v246, 0.7978846
    %v249 = vmul.f32 %v247, 0.7978846
    %v250 = vtanh.pop %v248
    %v251 = vtanh.pop %v249
    %v252 = vadd.f32 %v250, 1.0
    %v253 = vadd.f32 %v251, 1.0
    %v254 = vmul.f32 %v252, 0.5
    %v255 = vmul.f32 %v253, 0.5
    %v256 = vmul.f32 %v234, %v254
    %v257 = vmul.f32 %v237, %v255
    %v258 = vld [vmem:[#allocation3] sm:$0xff]
    %v259 = vld [vmem:[#allocation3 + $0x8] sm:$0xff]
    %v260 = vpack.c.bf16 %v257, %v256
    %v261 = vld [vmem:[#allocation13] sm:$0xf]
    %v262 = vld [vmem:[#allocation13 + $0x4] sm:$0xf]
    %v263 = vld [vmem:[#allocation13 + $0x8] sm:$0xf]
    %v264 = vld [vmem:[#allocation13 + $0xc] sm:$0xf]
    %v265 = vld [vmem:[#allocation13 + $0x10] sm:$0xf]
    %v266 = vld [vmem:[#allocation13 + $0x14] sm:$0xf]
    %v267 = vld [vmem:[#allocation13 + $0x18] sm:$0xf]
    %v268 = vld [vmem:[#allocation13 + $0x1c] sm:$0xf]
    %v269 = vld [vmem:[#allocation13 + $0x20] sm:$0xf]
    %v270 = vld [vmem:[#allocation13 + $0x24] sm:$0xf]
    %v271 = vld [vmem:[#allocation13 + $0x28] sm:$0xf]
    %v272 = vld [vmem:[#allocation13 + $0x2c] sm:$0xf]
    %v273 = vld [vmem:[#allocation13 + $0x30] sm:$0xf]
    %v274 = vld [vmem:[#allocation13 + $0x34] sm:$0xf]
    %v275 = vld [vmem:[#allocation13 + $0x38] sm:$0xf]
    %v276 = vld [vmem:[#allocation13 + $0x3c] sm:$0xf]
    %v293 = vunpack.c.l.b16 %v261
    %v294 = vunpack.c.l.b16 %v262
    %v295 = vunpack.c.l.b16 %v263
    %v296 = vunpack.c.l.b16 %v264
    %v297 = vunpack.c.l.b16 %v265
    %v298 = vunpack.c.l.b16 %v266
    %v299 = vunpack.c.l.b16 %v267
    %v300 = vunpack.c.l.b16 %v268
    %v301 = vunpack.c.l.b16 %v269
    %v302 = vunpack.c.l.b16 %v270
    %v303 = vunpack.c.l.b16 %v271
    %v304 = vunpack.c.l.b16 %v272
    %v305 = vunpack.c.l.b16 %v273
    %v306 = vunpack.c.l.b16 %v274
    %v307 = vunpack.c.l.b16 %v275
    %v308 = vunpack.c.l.b16 %v276
    %v309 = vpack.c.b16 %v294, %v293
    %v310 = vpack.c.b16 %v296, %v295
    %v311 = vpack.c.b16 %v298, %v297
    %v312 = vpack.c.b16 %v300, %v299
    %v313 = vpack.c.b16 %v302, %v301
    %v314 = vpack.c.b16 %v304, %v303
    %v315 = vpack.c.b16 %v306, %v305
    %v316 = vpack.c.b16 %v308, %v307
    %325 = vmatprep.subr.bf16.mxu0 0
    %326 = vmatpush1.bf16.msra.mxu0 %v309
    %327 = vmatprep.subr.bf16.mxu0 0
    %328 = vmatpush1.bf16.msra.mxu0 %v310
    %329 = vmatprep.subr.bf16.mxu0 0
    %330 = vmatpush1.bf16.msra.mxu0 %v311
    %331 = vmatprep.subr.bf16.mxu0 0
    %332 = vmatpush1.bf16.msra.mxu0 %v312
    %333 = vmatprep.subr.bf16.mxu0 0
    %334 = vmatpush1.bf16.msra.mxu0 %v313
    %335 = vmatprep.subr.bf16.mxu0 0
    %336 = vmatpush1.bf16.msra.mxu0 %v314
    %337 = vmatprep.subr.bf16.mxu0 0
    %338 = vmatpush1.bf16.msra.mxu0 %v315
    %339 = vmatprep.subr.bf16.mxu0 0
    %340 = vmatpush1.bf16.msra.mxu0 %v316
    %341 = vmatprep.subr.bf16.mxu0 0
    %342 = vmatpush1.bf16.msra.mxu0 0
    %343 = vmatprep.subr.bf16.mxu0 0
    %344 = vmatpush1.bf16.msra.mxu0 0
    %345 = vmatprep.subr.bf16.mxu0 0
    %346 = vmatpush1.bf16.msra.mxu0 0
    %347 = vmatprep.subr.bf16.mxu0 0
    %348 = vmatpush1.bf16.msra.mxu0 0
    %349 = vmatprep.subr.bf16.mxu0 0
    %350 = vmatpush1.bf16.msra.mxu0 0
    %351 = vmatprep.subr.bf16.mxu0 0
    %352 = vmatpush1.bf16.msra.mxu0 0
    %353 = vmatprep.subr.bf16.mxu0 0
    %354 = vmatpush1.bf16.msra.mxu0 0
    %355 = vmatprep.subr.bf16.mxu0 0
    %356 = vmatpush1.bf16.msra.mxu0 0
    %357 = vmatprep.mubr.bf16.mxu0 0
    %358 = vmatmul.mubr.bf16.gmra.mrb[0].mxu0 %v260
    %v359 = vpop.f32.mrb[0].mxu0
    %v360 = vadd.f32 0.0, %v359
    %v361 = vpop.f32.mrb[0].mxu0
    %v362 = vpop.f32.mrb[0].mxu0
    %v363 = vadd.f32 0.0, %v362
    %v364 = vpop.f32.mrb[0].mxu0
    %365 = vdwg.mxu0
    %v366 = vadd.f32 %v258, %v360
    %v367 = vadd.f32 %v259, %v363
    %368 = vst.msk [vmem:[#allocation3] sm:$0xff] %vm195, %v366
    %369 = vst.msk [vmem:[#allocation3 + $0x8] sm:$0xff] %vm195, %v367
    // Predicated region
    $region62: #{tpu_custom_call.1} parent=1 // pred_check
      %p370 = pneg %p115
    $region63: #{tpu_custom_call.1} parent=1 // pred_check_branch
      %372 = sbr.rel (%p370) target = $region65
    $region64: #{tpu_custom_call.1} parent=1 // pred_region
      %v373 = vld [vmem:[#allocation3] sm:$0xff]
      %v374 = vld [vmem:[#allocation3 + $0x8] sm:$0xff]
      %v375 = vld [vmem:[#allocation15] sm:$0x1]
      %v377 = vlaneseq
      %v378 = vshrl.u32 %v377, 7
      %v379 = vsub.s32 0, %v378
      %v380 = vrot.slane %v375, %v379
      %v382 = vadd.f32 %v373, %v380
      %v383 = vadd.f32 %v374, %v380
      %v384 = vld [vmem:[#allocation4] sm:$0xff]
      %v385 = vld [vmem:[#allocation4 + $0x8] sm:$0xff]
      %v386 = vadd.f32 %v384, %v382
      %v387 = vadd.f32 %v385, %v383
      %388 = vst.msk [vmem:[#allocation16] sm:$0xff] %vm195, %v386
      %389 = vst.msk [vmem:[#allocation16 + $0x8] sm:$0xff] %vm195, %v387
    $region65: #{tpu_custom_call.1} parent=1 // pred_fallthru
      _
    // Predicated region
    $region66: #{tpu_custom_call.1} parent=1 // pred_check
      _
    $region67: #{tpu_custom_call.1} parent=1 // pred_check_branch
      %391 = sbr.rel (0) target = $region69
    $region68: #{tpu_custom_call.1} parent=1 // pred_region
      %s393 = ssub.s32 256, 256
      %394 = vsyncadd [#allocation6], %s393
      %s395 = sshll.u32 [#allocation16], 4
      %s396 = int_to_ptr.vmem [resolvable:$true] %s395
      %401 = dma.vmem_to_hbm [thread:$0]  %s396, 256, %s7, [#allocation6], 128, 128, 8
    $region69: #{tpu_custom_call.1} parent=1 // pred_fallthru
      _
    // Predicated region
    $region70: #{tpu_custom_call.1} parent=1 // pred_check
      _
    $region71: #{tpu_custom_call.1} parent=1 // pred_check_branch
      %403 = sbr.rel (0) target = $region73
    $region72: #{tpu_custom_call.1} parent=1 // pred_region
      %404 = dma.done [#allocation6], 256
    $region73: #{tpu_custom_call.1} parent=1 // pred_fallthru
      _
    %405 = vsyncpa [#allocation5], 1
    %406 = vsyncpa [#allocation8], 1
    %407 = vsyncpa [#allocation11], 1
    %408 = vsyncpa [#allocation14], 1
    %409 = vsyncpa [#allocation6], 1

</llo_original>
